<compile_context>
chip_gen: v7x
topology: tpu7x:2x2x1
jax: 0.10.0
libtpu: 0.0.40
codegen_flags: <defaults>
</compile_context>

<pallas_src>
import functools

import jax
import jax.numpy as jnp
import numpy as np
from jax.experimental import pallas as pl
from jax.experimental.pallas import tpu as pltpu

S, B, C = 4, 2, 1
LAMBDA_NOOBJ = 0.5
LAMBDA_COORD = 5.0
PRED_F = C + B * 3   # 7 features per cell in predictions (class, c1, x1, y1, c2, x2, y2)
TGT_F = C + 3        # 4 features per cell in target      (class, exists, x, y)

# 32768 lanes per grid step: (7->8 + 4->8) sublanes * 32768 * 4 B * 2 buffers ~= 4.2 MiB VMEM,
# ~1.4 MB of useful HBM bytes per step -> per-step overhead well amortised.
DEFAULT_TILE_M = 32768


def _round_up(a, b):
    return (a + b - 1) // b * b


def yolo_loss_kernel(pred_ref, tgt_ref, out_ref):
    # pred_ref: (7, TILE_M), tgt_ref: (4, TILE_M) — features on sublanes, cells on lanes.
    pred = pred_ref[...].astype(jnp.float32)
    tgt = tgt_ref[...].astype(jnp.float32)

    cls_p = pred[0:1, :]
    conf1 = pred[1:2, :]
    x1 = pred[2:3, :]
    y1 = pred[3:4, :]
    conf2 = pred[4:5, :]
    x2 = pred[5:6, :]
    y2 = pred[6:7, :]

    cls_t = tgt[0:1, :]
    exists = tgt[1:2, :]   # objectness indicator; also the confidence target slot
    xt = tgt[2:3, :]
    yt = tgt[3:4, :]

    # Squared distances are enough: sqrt is monotonic, so argmax is unchanged.
    d1sq = (xt - x1) ** 2 + (yt - y1) ** 2
    d2sq = (xt - x2) ** 2 + (yt - y2) ** 2
    # torch.max over {d1, d2}: ties resolve to index 0  ->  best = (d2 > d1).
    best = (d2sq > d1sq).astype(jnp.float32)
    not_best = 1.0 - best

    sel_x = best * x2 + not_best * x1
    sel_y = best * y2 + not_best * y1
    sel_c = best * conf2 + not_best * conf1

    # Exact factoring: (e*a - e*b)^2 == e^2 * (a-b)^2 (no 0/1 assumption needed).
    ex2 = exists * exists
    noobj = 1.0 - exists
    no2 = noobj * noobj

    center_term = ex2 * ((sel_x - xt) ** 2 + (sel_y - yt) ** 2)
    object_term = ex2 * (sel_c - exists) ** 2
    noobj_term = no2 * ((conf1 - exists) ** 2 + (conf2 - exists) ** 2)
    class_term = ex2 * (cls_p - cls_t) ** 2

    per_cell = (LAMBDA_COORD * center_term
                + object_term
                + LAMBDA_NOOBJ * noobj_term
                + class_term)

    partial = jnp.sum(per_cell)  # one cross-lane reduce per block
    # Lane-dense output row (unmasked full-vreg store); wrapper reads [i, 0, 0] per block.
    out_ref[...] = jnp.full(out_ref.shape, partial, dtype=jnp.float32)


@functools.partial(jax.jit, static_argnames=("tile_m",))
def yolo_loss(predictions, target, *, tile_m=DEFAULT_TILE_M):
    """predictions: reshapeable to (-1, S, S, C+B*3); target: (N, S, S, C+3)."""
    predictions = predictions.reshape(-1, S, S, PRED_F)
    n = predictions.shape[0]
    m = n * S * S

    # Lane-dense layout: (features, cells).
    pred_t = predictions.reshape(m, PRED_F).T   # (7, M)
    tgt_t = target.reshape(m, TGT_F).T          # (4, M)

    # Tile selection: single block for small inputs, tile_m lanes otherwise.
    tile = min(_round_up(m, 128), _round_up(tile_m, 128))
    m_pad = _round_up(m, tile)
    if m_pad != m:
        # Zero padding contributes exactly 0 loss: exists=0 kills obj/center/class
        # terms and the no-object residual (conf - exists) is 0 - 0.
        pred_t = jnp.pad(pred_t, ((0, 0), (0, m_pad - m)))
        tgt_t = jnp.pad(tgt_t, ((0, 0), (0, m_pad - m)))
    num_blocks = m_pad // tile

    itemsize = jnp.dtype(pred_t.dtype).itemsize
    bytes_accessed = (PRED_F + TGT_F) * m_pad * itemsize + num_blocks * 8 * 128 * 4
    cost = pl.CostEstimate(flops=40 * m_pad, transcendentals=0,
                           bytes_accessed=bytes_accessed)

    partials = pl.pallas_call(
        yolo_loss_kernel,
        out_shape=jax.ShapeDtypeStruct((num_blocks, 8, 128), jnp.float32),
        grid=(num_blocks,),
        in_specs=[
            pl.BlockSpec((PRED_F, tile), lambda i: (0, i)),
            pl.BlockSpec((TGT_F, tile), lambda i: (0, i)),
        ],
        out_specs=pl.BlockSpec((1, 8, 128), lambda i: (i, 0, 0)),
        compiler_params=pltpu.CompilerParams(
            dimension_semantics=("parallel",),       # blocks shardable across v7x TCs
            vmem_limit_bytes=32 * 1024 * 1024,
        ),
        cost_estimate=cost,
    )(pred_t, tgt_t)

    return jnp.sum(partials[:, 0, 0])


def yolo_loss_ref(predictions, target):
    """Pure-JAX reference mirroring the PyTorch forward (for validation)."""
    predictions = predictions.reshape(-1, S, S, PRED_F).astype(jnp.float32)
    target = target.astype(jnp.float32)

    def euclid(a, b):
        return jnp.sqrt((b[..., 0:1] - a[..., 0:1]) ** 2
                        + (b[..., 1:2] - a[..., 1:2]) ** 2)

    d1 = euclid(predictions[..., C + 1:C + 3], target[..., C + 1:C + 3])
    d2 = euclid(predictions[..., C + 4:C + 6], target[..., C + 1:C + 3])
    distances = jnp.stack([d1, d2], axis=0)
    best = jnp.argmax(distances, axis=0).astype(jnp.float32)
    exists = target[..., C][..., None]

    center_pred = exists * (best * predictions[..., C + 4:C + 6]
                            + (1 - best) * predictions[..., C + 1:C + 3])
    center_tgt = exists * target[..., C + 1:C + 3]
    center_loss = jnp.sum((center_pred - center_tgt) ** 2)

    pred_center = (best * predictions[..., C + 3:C + 4]
                   + (1 - best) * predictions[..., C:C + 1])
    object_loss = jnp.sum((exists * pred_center - exists * target[..., C:C + 1]) ** 2)

    noobj = 1 - exists
    no_object_loss = jnp.sum((noobj * predictions[..., C:C + 1]
                              - noobj * target[..., C:C + 1]) ** 2)
    no_object_loss += jnp.sum((noobj * predictions[..., C + 3:C + 4]
                               - noobj * target[..., C:C + 1]) ** 2)

    class_loss = jnp.sum((exists * predictions[..., :C]
                          - exists * target[..., :C]) ** 2)

    return (LAMBDA_COORD * center_loss + object_loss
            + LAMBDA_NOOBJ * no_object_loss + class_loss)


def _make_inputs(key, n):
    k_pred, k_xy, k_cls, k_exist = jax.random.split(key, 4)
    predictions = jax.random.normal(k_pred, (n, S, S, PRED_F), dtype=jnp.float32)
    tgt_cls = jax.random.uniform(k_cls, (n, S, S, C), dtype=jnp.float32)
    tgt_exist = (jax.random.uniform(k_exist, (n, S, S, 1)) > 0.5).astype(jnp.float32)
    tgt_xy = jax.random.uniform(k_xy, (n, S, S, 2), dtype=jnp.float32)
    target = jnp.concatenate([tgt_cls, tgt_exist, tgt_xy], axis=-1)  # (n, S, S, 4)
    return predictions, target


if __name__ == "__main__":
    key = jax.random.PRNGKey(0)
    k_small, k_big = jax.random.split(key, 2)

    # Small case (N=2 -> M=32 cells, single 128-lane block), default tile.
    pred_s, tgt_s = _make_inputs(k_small, 2)
    out_s = jax.block_until_ready(yolo_loss(pred_s, tgt_s))
    ref_s = jax.block_until_ready(yolo_loss_ref(pred_s, tgt_s))
    np.testing.assert_allclose(np.asarray(out_s), np.asarray(ref_s),
                               rtol=1e-4, atol=1e-4)

    # Larger case with an explicit small tile to exercise the multi-block grid
    # and zero padding (M = 300*16 = 4800, tile 1024 -> 5 blocks, 320 padded cells).
    pred_b, tgt_b = _make_inputs(k_big, 300)
    out_b = jax.block_until_ready(yolo_loss(pred_b, tgt_b, tile_m=1024))
    ref_b = jax.block_until_ready(yolo_loss_ref(pred_b, tgt_b))
    np.testing.assert_allclose(np.asarray(out_b), np.asarray(ref_b),
                               rtol=1e-4, atol=1e-4)

    # Same large case through the default (single-block) path.
    out_b2 = jax.block_until_ready(yolo_loss(pred_b, tgt_b))
    np.testing.assert_allclose(np.asarray(out_b2), np.asarray(ref_b),
                               rtol=1e-4, atol=1e-4)

    print("KERNEL_OK")
</pallas_src>

<mosaic_0001>
module attributes {stable_mosaic.version = 11 : i64} {
  func.func @yolo_loss_kernel(%arg0: i32, %arg1: memref<7x128xf32, #tpu.memory_space<vmem>>, %arg2: memref<4x128xf32, #tpu.memory_space<vmem>>, %arg3: memref<1x8x128xf32, #tpu.memory_space<vmem>>) attributes {dimension_semantics = [#tpu.dimension_semantics<parallel>], iteration_bounds = array<i64: 1>, scalar_prefetch = 0 : i64, scratch_operands = 0 : i64, tpu.core_type = #tpu.core_type<tc>, window_params = [{transform_indices = @transform_0, window_bounds = array<i64: 7, 128>}, {transform_indices = @transform_1, window_bounds = array<i64: 4, 128>}, {transform_indices = @transform_2, window_bounds = array<i64: 1, 8, 128>}]} {
    %c0 = arith.constant 0 : index
    %c0_0 = arith.constant 0 : index
    %0 = vector.load %arg1[%c0, %c0_0] : memref<7x128xf32, #tpu.memory_space<vmem>>, vector<7x128xf32>
    %c0_1 = arith.constant 0 : index
    %c0_2 = arith.constant 0 : index
    %1 = vector.load %arg2[%c0_1, %c0_2] : memref<4x128xf32, #tpu.memory_space<vmem>>, vector<4x128xf32>
    %2 = vector.extract_strided_slice %0 {offsets = [0, 0], sizes = [1, 128], strides = [1, 1]} : vector<7x128xf32> to vector<1x128xf32>
    %3 = vector.extract_strided_slice %0 {offsets = [1, 0], sizes = [1, 128], strides = [1, 1]} : vector<7x128xf32> to vector<1x128xf32>
    %4 = vector.extract_strided_slice %0 {offsets = [2, 0], sizes = [1, 128], strides = [1, 1]} : vector<7x128xf32> to vector<1x128xf32>
    %5 = vector.extract_strided_slice %0 {offsets = [3, 0], sizes = [1, 128], strides = [1, 1]} : vector<7x128xf32> to vector<1x128xf32>
    %6 = vector.extract_strided_slice %0 {offsets = [4, 0], sizes = [1, 128], strides = [1, 1]} : vector<7x128xf32> to vector<1x128xf32>
    %7 = vector.extract_strided_slice %0 {offsets = [5, 0], sizes = [1, 128], strides = [1, 1]} : vector<7x128xf32> to vector<1x128xf32>
    %8 = vector.extract_strided_slice %0 {offsets = [6, 0], sizes = [1, 128], strides = [1, 1]} : vector<7x128xf32> to vector<1x128xf32>
    %9 = vector.extract_strided_slice %1 {offsets = [0, 0], sizes = [1, 128], strides = [1, 1]} : vector<4x128xf32> to vector<1x128xf32>
    %10 = vector.extract_strided_slice %1 {offsets = [1, 0], sizes = [1, 128], strides = [1, 1]} : vector<4x128xf32> to vector<1x128xf32>
    %11 = vector.extract_strided_slice %1 {offsets = [2, 0], sizes = [1, 128], strides = [1, 1]} : vector<4x128xf32> to vector<1x128xf32>
    %12 = vector.extract_strided_slice %1 {offsets = [3, 0], sizes = [1, 128], strides = [1, 1]} : vector<4x128xf32> to vector<1x128xf32>
    %13 = arith.subf %11, %4 : vector<1x128xf32>
    %14 = arith.mulf %13, %13 : vector<1x128xf32>
    %15 = arith.subf %12, %5 : vector<1x128xf32>
    %16 = arith.mulf %15, %15 : vector<1x128xf32>
    %17 = arith.addf %14, %16 : vector<1x128xf32>
    %18 = arith.subf %11, %7 : vector<1x128xf32>
    %19 = arith.mulf %18, %18 : vector<1x128xf32>
    %20 = arith.subf %12, %8 : vector<1x128xf32>
    %21 = arith.mulf %20, %20 : vector<1x128xf32>
    %22 = arith.addf %19, %21 : vector<1x128xf32>
    %23 = arith.cmpf ogt, %22, %17 : vector<1x128xf32>
    %24 = arith.extui %23 : vector<1x128xi1> to vector<1x128xi32>
    %25 = arith.sitofp %24 : vector<1x128xi32> to vector<1x128xf32>
    %cst = arith.constant 1.000000e+00 : f32
    %26 = vector.broadcast %cst : f32 to vector<1x128xf32>
    %27 = arith.subf %26, %25 : vector<1x128xf32>
    %28 = arith.mulf %25, %7 : vector<1x128xf32>
    %29 = arith.mulf %27, %4 : vector<1x128xf32>
    %30 = arith.addf %28, %29 : vector<1x128xf32>
    %31 = arith.mulf %25, %8 : vector<1x128xf32>
    %32 = arith.mulf %27, %5 : vector<1x128xf32>
    %33 = arith.addf %31, %32 : vector<1x128xf32>
    %34 = arith.mulf %25, %6 : vector<1x128xf32>
    %35 = arith.mulf %27, %3 : vector<1x128xf32>
    %36 = arith.addf %34, %35 : vector<1x128xf32>
    %37 = arith.mulf %10, %10 : vector<1x128xf32>
    %cst_3 = arith.constant 1.000000e+00 : f32
    %38 = vector.broadcast %cst_3 : f32 to vector<1x128xf32>
    %39 = arith.subf %38, %10 : vector<1x128xf32>
    %40 = arith.mulf %39, %39 : vector<1x128xf32>
    %41 = arith.subf %30, %11 : vector<1x128xf32>
    %42 = arith.mulf %41, %41 : vector<1x128xf32>
    %43 = arith.subf %33, %12 : vector<1x128xf32>
    %44 = arith.mulf %43, %43 : vector<1x128xf32>
    %45 = arith.addf %42, %44 : vector<1x128xf32>
    %46 = arith.mulf %37, %45 : vector<1x128xf32>
    %47 = arith.subf %36, %10 : vector<1x128xf32>
    %48 = arith.mulf %47, %47 : vector<1x128xf32>
    %49 = arith.mulf %37, %48 : vector<1x128xf32>
    %50 = arith.subf %3, %10 : vector<1x128xf32>
    %51 = arith.mulf %50, %50 : vector<1x128xf32>
    %52 = arith.subf %6, %10 : vector<1x128xf32>
    %53 = arith.mulf %52, %52 : vector<1x128xf32>
    %54 = arith.addf %51, %53 : vector<1x128xf32>
    %55 = arith.mulf %40, %54 : vector<1x128xf32>
    %56 = arith.subf %2, %9 : vector<1x128xf32>
    %57 = arith.mulf %56, %56 : vector<1x128xf32>
    %58 = arith.mulf %37, %57 : vector<1x128xf32>
    %cst_4 = arith.constant 5.000000e+00 : f32
    %59 = vector.broadcast %cst_4 : f32 to vector<1x128xf32>
    %60 = arith.mulf %59, %46 : vector<1x128xf32>
    %61 = arith.addf %60, %49 : vector<1x128xf32>
    %cst_5 = arith.constant 5.000000e-01 : f32
    %62 = vector.broadcast %cst_5 : f32 to vector<1x128xf32>
    %63 = arith.mulf %62, %55 : vector<1x128xf32>
    %64 = arith.addf %61, %63 : vector<1x128xf32>
    %65 = arith.addf %64, %58 : vector<1x128xf32>
    %66 = vector.shape_cast %65 : vector<1x128xf32> to vector<1x1x128xf32>
    %cst_6 = arith.constant dense<0.000000e+00> : vector<1xf32>
    %67 = vector.multi_reduction <add>, %66, %cst_6 [1, 2] : vector<1x1x128xf32> to vector<1xf32>
    %68 = vector.shape_cast %67 : vector<1xf32> to vector<1x1x1xf32>
    %69 = vector.extract %68[0, 0, 0] : f32 from vector<1x1x1xf32>
    %70 = vector.broadcast %69 : f32 to vector<1x8x128xf32>
    %c0_7 = arith.constant 0 : index
    %c0_8 = arith.constant 0 : index
    %c0_9 = arith.constant 0 : index
    %71 = vector.load %arg3[%c0_7, %c0_8, %c0_9] : memref<1x8x128xf32, #tpu.memory_space<vmem>>, vector<1x8x128xf32>
    tpu.vector_store %arg3[%c0_7, %c0_8, %c0_9], %70 {strides = array<i32>} : memref<1x8x128xf32, #tpu.memory_space<vmem>>, vector<1x8x128xf32>,
    return
  }
  func.func @transform_0(%arg0: i32) -> (i32, i32) {
    %c0_i32 = arith.constant 0 : i32
    %c0_i32_0 = arith.constant 0 : i32
    return %c0_i32, %arg0 : i32, i32
  }
  func.func @transform_1(%arg0: i32) -> (i32, i32) {
    %c0_i32 = arith.constant 0 : i32
    %c0_i32_0 = arith.constant 0 : i32
    return %c0_i32, %arg0 : i32, i32
  }
  func.func @transform_2(%arg0: i32) -> (i32, i32, i32) {
    %c0_i32 = arith.constant 0 : i32
    %c0_i32_0 = arith.constant 0 : i32
    %c0_i32_1 = arith.constant 0 : i32
    return %arg0, %c0_i32, %c0_i32_0 : i32, i32, i32
  }
}

</mosaic_0001>

<llo_original>
// kernel: yolo_loss.1
$region0: #{yolo_loss.1}
  #allocation0 [shape = 'u32[]', space=smem, size = 0x4, offset = 0x4, fixed_abs, tag = 'smem constant byte address 0x4 - core index']
  #allocation1 [shape = 'u32[144,128]{1,0:T(1,128)}', space=vmem, size = 0x12000, scoped, tag = 'internal scratch']
  %s0 = inlined_call_operand.vmem [shape: f32[7,128], index: 0, kind: input, shape index: {}]
  %s1 = inlined_call_operand.vmem [shape: f32[4,128], index: 1, kind: input, shape index: {}]
  %s2 = inlined_call_operand.vmem [shape: f32[1,8,128], index: 2, kind: output, shape index: {}]
  %s3 = sld [smem:[#allocation0]]
  $region18: #{yolo_loss.1} parent=0
    _
  %s5 = ssub.s32 1, %s3
  %s6 = scalar_select 0, %s5, %s3
  // Predicated region
  $region2: #{yolo_loss.1} parent=0 // pred_check
    _
  $region3: #{yolo_loss.1} parent=0 // pred_check_branch
    %8 = sbr.rel (0) target = $region5
  $region4: #{yolo_loss.1} parent=0 // pred_region
    _
  $region5: #{yolo_loss.1} parent=0 // pred_fallthru
    _
  // Predicated region
  $region6: #{yolo_loss.1} parent=0 // pred_check
    _
  $region7: #{yolo_loss.1} parent=0 // pred_check_branch
    %10 = sbr.rel (0) target = $region9
  $region8: #{yolo_loss.1} parent=0 // pred_region
    _
  $region9: #{yolo_loss.1} parent=0 // pred_fallthru
    _
  %v11 = vld [vmem:[%s0] sm:$0x7f]
  %v12 = vld [vmem:[%s1] sm:$0xf]
  %v13 = vsub.f32 %v12, %v11
  %v14 = vmul.f32 %v13, %v13
  %v16 = vrot.slane %v14, 1
  %v18 = vadd.f32 %v14, %v16
  %v20 = vrot.slane %v11, 3
  %v22 = vsub.f32 %v12, %v20
  %v23 = vmul.f32 %v22, %v22
  %v25 = vrot.slane %v23, 1
  %v27 = vadd.f32 %v23, %v25
  %vm28 = vcmp.gt.f32.partialorder %v27, %v18
  %v29 = vsel %vm28, 1, 0
  %v30 = vcvt.s32.f32 %v29
  %v31 = vsub.f32 1.0, %v30
  %v32 = vmul.f32 %v30, %v20
  %v33 = vmul.f32 %v31, %v11
  %v34 = vadd.f32 %v32, %v33
  %v35 = vrot.slane %v11, 4
  %v37 = vmul.f32 %v30, %v35
  %v38 = vrot.slane %v11, 1
  %v40 = vmul.f32 %v31, %v38
  %v41 = vadd.f32 %v37, %v40
  %v42 = vrot.slane %v11, 2
  %v44 = vmul.f32 %v30, %v42
  %v45 = vrot.slane %v11, 7
  %v47 = vmul.f32 %v31, %v45
  %v48 = vadd.f32 %v44, %v47
  %v49 = vmul.f32 %v12, %v12
  %v50 = vsub.f32 1.0, %v12
  %v51 = vmul.f32 %v50, %v50
  %v52 = vsub.f32 %v34, %v12
  %v53 = vmul.f32 %v52, %v52
  %v55 = vrot.slane %v12, 1
  %v57 = vsub.f32 %v41, %v55
  %v58 = vmul.f32 %v57, %v57
  %v59 = vadd.f32 %v53, %v58
  %v61 = vrot.slane %v59, 1
  %v63 = vmul.f32 %v49, %v61
  %v64 = vrot.slane %v12, 7
  %v66 = vsub.f32 %v48, %v64
  %v67 = vmul.f32 %v66, %v66
  %v69 = vrot.slane %v67, 1
  %v71 = vmul.f32 %v49, %v69
  %v72 = vsub.f32 %v11, %v12
  %v73 = vmul.f32 %v72, %v72
  %v74 = vrot.slane %v12, 5
  %v76 = vsub.f32 %v11, %v74
  %v77 = vmul.f32 %v76, %v76
  %v79 = vrot.slane %v77, 3
  %v81 = vadd.f32 %v73, %v79
  %v82 = vmul.f32 %v51, %v81
  %v84 = vrot.slane %v73, 7
  %v86 = vmul.f32 %v49, %v84
  %v87 = vmul.f32 %v63, 5.0
  %v88 = vadd.f32 %v87, %v71
  %v89 = vmul.f32 %v82, 0.5
  %v90 = vadd.f32 %v88, %v89
  %v91 = vadd.f32 %v90, %v86
  %v93 = vrot.slane %v91, 1
  %vm95 = vcmask 1040384
  %v96 = vsel %vm95, %v93, 0.0
  %97 = vadd.xlane.f32.xlu0 %v96
  %v98 = vpop.xlane.xlu0 %97
  %v99 = vrot.slane %v98, 4
  %v100 = vadd.f32 %v98, %v99
  %v101 = vrot.slane %v100, 2
  %v102 = vadd.f32 %v100, %v101
  %v103 = vrot.slane %v102, 1
  %v104 = vadd.f32 %v102, %v103
  %s105 = vtos %v104
  %v106 = vstv %s105
  %107 = vst [vmem:[%s2] sm:$0xff] %v106
  // Predicated region
  $region10: #{yolo_loss.1} parent=0 // pred_check
    _
  $region11: #{yolo_loss.1} parent=0 // pred_check_branch
    %109 = sbr.rel (0) target = $region13
  $region12: #{yolo_loss.1} parent=0 // pred_region
    _
  $region13: #{yolo_loss.1} parent=0 // pred_fallthru
    _
  // Predicated region
  $region14: #{yolo_loss.1} parent=0 // pred_check
    _
  $region15: #{yolo_loss.1} parent=0 // pred_check_branch
    %111 = sbr.rel (0) target = $region17
  $region16: #{yolo_loss.1} parent=0 // pred_region
    _
  $region17: #{yolo_loss.1} parent=0 // pred_fallthru
    _

</llo_original>
